<compile_context>
chip_gen: v5e
topology: v5e:2x2
jax: 0.10.0
libtpu: 0.0.40
codegen_flags: <defaults>
</compile_context>

<pallas_src>
import functools

import jax
import jax.numpy as jnp
from jax.experimental import pallas as pl
from jax.experimental.pallas import tpu as pltpu


def _cdiv(a, b):
    return -(-a // b)


def _default_tile_bytes():
    # ~8 MiB/buffer is near the HBM roofline on every generation and keeps the
    # double-buffered pipeline well under v7x's 64 MiB per-core VMEM; on
    # 128 MiB-VMEM parts (v5e/v6e) use 16 MiB tiles to shrink per-step overhead.
    try:
        info = pltpu.get_tpu_info()
        vmem = getattr(info, "vmem_capacity_bytes", None)
        if vmem is not None and vmem >= (100 << 20):
            return 16 << 20
    except Exception:
        pass
    return 8 << 20


def _bpr_partial_kernel(q_ref, out_ref, *, bsz, tb, steps_per_core):
    """Accumulate per-core batch sums of q into the resident output block.

    q_ref:   (tb, F) tile of q (any float dtype; upcast to f32 in-register)
    out_ref: (R, F)  f32 output block; its block index is constant across the
             reduction axis, so it stays resident in VMEM and acts as the
             accumulator (R/8 independent vadd chains).
    """
    c = pl.program_id(0)          # parallel (core) axis
    i = pl.program_id(1)          # batch-tile (reduction) axis
    r, f = out_ref.shape

    @pl.when(i == 0)
    def _init():
        out_ref[...] = jnp.zeros_like(out_ref)

    row0 = (c * steps_per_core + i) * tb

    # Fast path: tile fully inside the batch -> pure vreg loads + adds.
    @pl.when(row0 + tb <= bsz)
    def _full_tile():
        q = q_ref[...].astype(jnp.float32)
        out_ref[...] += q.reshape(-1, r, f).sum(axis=0)

    # Ragged / overflow tile: zero rows whose logical batch index is >= bsz
    # (Pallas does not guarantee zeros in the padded part of the last block).
    @pl.when(row0 + tb > bsz)
    def _ragged_tile():
        rows = jax.lax.broadcasted_iota(jnp.int32, (tb, 1), 0) + row0
        q = jnp.where(rows < bsz, q_ref[...].astype(jnp.float32), 0.0)
        out_ref[...] += q.reshape(-1, r, f).sum(axis=0)


def _bpr_finalize_kernel(part_ref, p_ref, out_ref, *, inv_bsz):
    """Fold per-core partial sums and compute the scalar KL(BPR) term."""
    q_prime = jnp.sum(part_ref[...], axis=0, keepdims=True) * inv_bsz     # (1, F)
    log_q = jnp.log(q_prime + 1e-20)
    log_p = jnp.log(p_ref[...] + 1e-20)
    out_ref[0] = jnp.sum((log_q - log_p) * q_prime)


def batch_prior_regularization(q, p, *, target_tile_bytes=None):
    """q: (bsz, n_act, m_act) float (f32/bf16), p: (n_act, m_act) -> scalar f32."""
    bsz, n_act, m_act = q.shape
    assert p.shape == (n_act, m_act)
    if target_tile_bytes is None:
        target_tile_bytes = _default_tile_bytes()

    flat = n_act * m_act
    # Free, contiguous reshapes only -- no padding copies of q in HBM.
    q2 = q.reshape(bsz, flat)
    p2 = p.reshape(1, flat).astype(jnp.float32)

    row_bytes = flat * q2.dtype.itemsize
    rows_target = max(1, target_tile_bytes // max(row_bytes, 1))

    # Batch tile (tb) and accumulator rows (R): tb <= bsz so only the *last*
    # grid tile can be ragged; tb is a multiple of R; R = 32 -> 4 independent
    # f32 add chains so the VALU chain never out-lasts the tile DMA.
    if bsz < 8:
        tb = r = bsz                              # full-dim block (always legal)
    elif bsz < 32 or rows_target < 32:
        tb, r = 8, 8
    else:
        tb = min((rows_target // 32) * 32, (bsz // 32) * 32)
        tb = max(tb, 32)
        r = 32

    total_blocks = _cdiv(bsz, tb)
    nc = 2 if total_blocks >= 2 else 1            # both TensorCores on v7x
    steps = _cdiv(total_blocks, nc)

    def q_index(c, i):
        blk = c * steps + i
        # Clamp the (at most one) overflow step of the second core back in
        # bounds; its rows are fully masked in-kernel so it contributes zero.
        return (jnp.minimum(blk, total_blocks - 1), 0)

    tile_bytes = tb * row_bytes
    vmem_needed = 2 * tile_bytes + 2 * (r * flat * 4)
    vmem_limit = int(min(max(vmem_needed + (16 << 20), 32 << 20), 60 << 20))

    partial_kernel = functools.partial(
        _bpr_partial_kernel, bsz=bsz, tb=tb, steps_per_core=steps)

    partials = pl.pallas_call(
        partial_kernel,
        out_shape=jax.ShapeDtypeStruct((nc * r, flat), jnp.float32),
        grid_spec=pltpu.PrefetchScalarGridSpec(
            num_scalar_prefetch=0,
            grid=(nc, steps),
            in_specs=[pl.BlockSpec((tb, flat), q_index)],
            out_specs=pl.BlockSpec((r, flat), lambda c, i: (c, 0)),
        ),
        compiler_params=pltpu.CompilerParams(
            dimension_semantics=("parallel", "arbitrary"),
            vmem_limit_bytes=vmem_limit,
        ),
    )(q2)

    finalize_kernel = functools.partial(_bpr_finalize_kernel, inv_bsz=1.0 / bsz)
    out = pl.pallas_call(
        finalize_kernel,
        out_shape=jax.ShapeDtypeStruct((1,), jnp.float32),
        in_specs=[pl.BlockSpec(memory_space=pltpu.VMEM),
                  pl.BlockSpec(memory_space=pltpu.VMEM)],
        out_specs=pl.BlockSpec(memory_space=pltpu.SMEM),
    )(partials, p2)
    return out[0]


def _reference(q, p):
    q_prime = jnp.mean(jnp.swapaxes(q, 0, 1).astype(jnp.float32), axis=1)
    log_q = jnp.log(q_prime + 1e-20)
    log_p = jnp.log(p.astype(jnp.float32) + 1e-20)
    return jnp.sum((log_q - log_p) * q_prime)


if __name__ == "__main__":
    key = jax.random.PRNGKey(0)

    # (bsz, n_act, m_act, dtype, wrapper kwargs). Chosen to exercise:
    #   A) multi-tile grid + 2-core split + ragged last tile + clamped overflow step
    #   B) tiny batch (< 8): full-dim blocks, single core
    #   C) 8 <= bsz < 32: 8-row tiles, ragged last tile, 2-core split
    #   D) typical shape, single large tile (default byte-sized target)
    #   E) bf16 activations streamed directly (f32 accumulation in-kernel)
    configs = [
        (70, 8, 16, jnp.float32, {"target_tile_bytes": 1 << 14}),
        (5, 6, 20, jnp.float32, {}),
        (20, 8, 16, jnp.float32, {}),
        (256, 8, 16, jnp.float32, {}),
        (64, 8, 16, jnp.bfloat16, {"target_tile_bytes": 1 << 13}),
    ]

    for idx, (bsz, n_act, m_act, dtype, kwargs) in enumerate(configs):
        kq, key = jax.random.split(key)
        logits = jax.random.normal(kq, (bsz, n_act, m_act), jnp.float32)
        q = jax.nn.softmax(logits, axis=-1).astype(dtype)
        # CategoricalActEncoder uses a uniform prior p = 1/m_act.
        p = jnp.full((n_act, m_act), 1.0 / m_act, jnp.float32)

        out = jax.block_until_ready(batch_prior_regularization(q, p, **kwargs))
        ref = jax.block_until_ready(_reference(q, p))
        tol = 1e-4 if dtype == jnp.bfloat16 else 1e-5
        assert jnp.allclose(out, ref, rtol=tol, atol=1e-5), (idx, out, ref)

    print("KERNEL_OK")
</pallas_src>

<mosaic_0001>
module attributes {stable_mosaic.version = 11 : i64} {
  func.func @_bpr_partial_kernel(%arg0: i32, %arg1: i32, %arg2: memref<32x128xf32, #tpu.memory_space<vmem>>, %arg3: memref<32x128xf32, #tpu.memory_space<vmem>>) attributes {dimension_semantics = [#tpu.dimension_semantics<parallel>, #tpu.dimension_semantics<arbitrary>], iteration_bounds = array<i64: 2, 2>, scalar_prefetch = 0 : i64, scratch_operands = 0 : i64, tpu.core_type = #tpu.core_type<tc>, window_params = [{transform_indices = @transform_0, window_bounds = array<i64: 32, 128>}, {transform_indices = @transform_1, window_bounds = array<i64: 32, 128>}]} {
    %c0_i32 = arith.constant 0 : i32
    %0 = arith.cmpi eq, %arg1, %c0_i32 : i32
    %1 = arith.extui %0 : i1 to i32
    %c0_i32_0 = arith.constant 0 : i32
    %2 = arith.cmpi ne, %1, %c0_i32_0 : i32
    scf.if %2 {
      %cst = arith.constant 0.000000e+00 : f32
      %14 = vector.broadcast %cst : f32 to vector<32x128xf32>
      %c0 = arith.constant 0 : index
      %c0_6 = arith.constant 0 : index
      %15 = vector.load %arg3[%c0, %c0_6] : memref<32x128xf32, #tpu.memory_space<vmem>>, vector<32x128xf32>
      tpu.vector_store %arg3[%c0, %c0_6], %14 {strides = array<i32>} : memref<32x128xf32, #tpu.memory_space<vmem>>, vector<32x128xf32>,
    } else {
    }
    %c2_i32 = arith.constant 2 : i32
    %3 = arith.muli %arg0, %c2_i32 : i32
    %4 = arith.addi %3, %arg1 : i32
    %c32_i32 = arith.constant 32 : i32
    %5 = arith.muli %4, %c32_i32 : i32
    %c32_i32_1 = arith.constant 32 : i32
    %6 = arith.addi %5, %c32_i32_1 : i32
    %c70_i32 = arith.constant 70 : i32
    %7 = arith.cmpi sle, %6, %c70_i32 : i32
    %8 = arith.extui %7 : i1 to i32
    %c0_i32_2 = arith.constant 0 : i32
    %9 = arith.cmpi ne, %8, %c0_i32_2 : i32
    scf.if %9 {
      %c0 = arith.constant 0 : index
      %c0_6 = arith.constant 0 : index
      %14 = vector.load %arg2[%c0, %c0_6] : memref<32x128xf32, #tpu.memory_space<vmem>>, vector<32x128xf32>
      %c0_7 = arith.constant 0 : index
      %c0_8 = arith.constant 0 : index
      %15 = vector.load %arg3[%c0_7, %c0_8] : memref<32x128xf32, #tpu.memory_space<vmem>>, vector<32x128xf32>
      %16 = vector.shape_cast %14 : vector<32x128xf32> to vector<1x32x128xf32>
      %cst = arith.constant dense<0.000000e+00> : vector<32x128xf32>
      %17 = vector.multi_reduction <add>, %16, %cst [0] : vector<1x32x128xf32> to vector<32x128xf32>
      %18 = arith.addf %15, %17 : vector<32x128xf32>
      %c0_9 = arith.constant 0 : index
      %c0_10 = arith.constant 0 : index
      %19 = vector.load %arg3[%c0_9, %c0_10] : memref<32x128xf32, #tpu.memory_space<vmem>>, vector<32x128xf32>
      tpu.vector_store %arg3[%c0_9, %c0_10], %18 {strides = array<i32>} : memref<32x128xf32, #tpu.memory_space<vmem>>, vector<32x128xf32>,
    } else {
    }
    %c32_i32_3 = arith.constant 32 : i32
    %10 = arith.addi %5, %c32_i32_3 : i32
    %c70_i32_4 = arith.constant 70 : i32
    %11 = arith.cmpi sgt, %10, %c70_i32_4 : i32
    %12 = arith.extui %11 : i1 to i32
    %c0_i32_5 = arith.constant 0 : i32
    %13 = arith.cmpi ne, %12, %c0_i32_5 : i32
    scf.if %13 {
      %14 = tpu.iota {dimensions = array<i32: 0>} : vector<32x1xi32>
      %15 = vector.broadcast %5 : i32 to vector<32x1xi32>
      %16 = arith.addi %14, %15 : vector<32x1xi32>
      %c70_i32_6 = arith.constant 70 : i32
      %17 = vector.broadcast %c70_i32_6 : i32 to vector<32x1xi32>
      %18 = arith.cmpi slt, %16, %17 : vector<32x1xi32>
      %c0 = arith.constant 0 : index
      %c0_7 = arith.constant 0 : index
      %19 = vector.load %arg2[%c0, %c0_7] : memref<32x128xf32, #tpu.memory_space<vmem>>, vector<32x128xf32>
      %cst = arith.constant 0.000000e+00 : f32
      %20 = vector.shape_cast %18 : vector<32x1xi1> to vector<32x1xi1>
      %21 = vector.broadcast %20 : vector<32x1xi1> to vector<32x128xi1>
      %22 = vector.broadcast %cst : f32 to vector<32x128xf32>
      %23 = arith.select %21, %19, %22 : vector<32x128xi1>, vector<32x128xf32>
      %c0_8 = arith.constant 0 : index
      %c0_9 = arith.constant 0 : index
      %24 = vector.load %arg3[%c0_8, %c0_9] : memref<32x128xf32, #tpu.memory_space<vmem>>, vector<32x128xf32>
      %25 = vector.shape_cast %23 : vector<32x128xf32> to vector<1x32x128xf32>
      %cst_10 = arith.constant dense<0.000000e+00> : vector<32x128xf32>
      %26 = vector.multi_reduction <add>, %25, %cst_10 [0] : vector<1x32x128xf32> to vector<32x128xf32>
      %27 = arith.addf %24, %26 : vector<32x128xf32>
      %c0_11 = arith.constant 0 : index
      %c0_12 = arith.constant 0 : index
      %28 = vector.load %arg3[%c0_11, %c0_12] : memref<32x128xf32, #tpu.memory_space<vmem>>, vector<32x128xf32>
      tpu.vector_store %arg3[%c0_11, %c0_12], %27 {strides = array<i32>} : memref<32x128xf32, #tpu.memory_space<vmem>>, vector<32x128xf32>,
    } else {
    }
    return
  }
  func.func @transform_0(%arg0: i32, %arg1: i32) -> (i32, i32) {
    %c2_i32 = arith.constant 2 : i32
    %0 = arith.muli %arg0, %c2_i32 : i32
    %1 = arith.addi %0, %arg1 : i32
    %c2_i32_0 = arith.constant 2 : i32
    %2 = arith.minsi %1, %c2_i32_0 : i32
    %c0_i32 = arith.constant 0 : i32
    %c0_i32_1 = arith.constant 0 : i32
    return %2, %c0_i32 : i32, i32
  }
  func.func @transform_1(%arg0: i32, %arg1: i32) -> (i32, i32) {
    %c0_i32 = arith.constant 0 : i32
    %c0_i32_0 = arith.constant 0 : i32
    return %arg0, %c0_i32 : i32, i32
  }
}

</mosaic_0001>

<llo_original>
// kernel: tpu_custom_call.1
$region0: #{tpu_custom_call.1}
  #allocation0 [shape = 'u32[]', space=smem, size = 0x4, offset = 0x4, fixed_abs, tag = 'smem constant byte address 0x4 - core index']
  #allocation1 [shape = 'u32[72,128]{1,0:T(1,128)}', space=vmem, size = 0x9000, scoped, tag = 'internal scratch']
  %s0 = inlined_call_operand.hbm [shape: f32[70,128], index: 0, kind: input, shape index: {}]
  %s1 = inlined_call_operand.hbm [shape: f32[64,128], index: 1, kind: output, shape index: {}]
  %s2 = sld [smem:[#allocation0]]
  $region53: #{tpu_custom_call.1} parent=0
    _
  %s4 = ssub.s32 1, %s2
  %s5 = scalar_select 0, %s4, %s2
  $region1: #{tpu_custom_call.1} parent=0
    #allocation2 [shape = 'u8[32768]{0}', space=vmem, size = 0x8000, scoped, tag = 'input window, operand 0']
    #allocation3 [shape = 's32[2]{0}', space=sflag, size = 0x8, scoped, tag = 'scoped memory for tpu_custom_call.1']
    #allocation4 [shape = 's32[2]{0}', space=sflag, size = 0x8, scoped, tag = 'scoped memory for tpu_custom_call.1']
    #allocation5 [shape = 'u8[32768]{0}', space=vmem, size = 0x8000, scoped, tag = 'output window, operand 0']
    %6 = vsyncpa [#allocation3], 0
    %s7 = scalar_lea.sflag [#allocation3], 1
    %8 = vsyncpa %s7, 0
    %9 = vsyncpa [#allocation4], 0
    %s10 = scalar_lea.sflag [#allocation4], 1
    %11 = vsyncpa %s10, 0
    loop: start=0, step=1, limit=6
    $region2: #{tpu_custom_call.1} parent=1 // loop_pre_header
      _
    $region3: #{tpu_custom_call.1} parent=1 // loop_header
      %s13 = sphi 0, %s17
      %p14 = scmp.ge.s32.totalorder %s13, 6
      %s20 = sphi 0, %s32
      %s21 = sphi 0, %s28
      %s22 = sphi 0, %s20
      %s23 = sphi 0, %s21
      %s24 = sphi 0, %s22
      %s25 = sphi 0, %s23
      %s43 = sphi 0, %s45
      %s46 = sphi 0, %s43
      %s47 = sphi 0, %s46
      %s63 = sphi 0, %s47
      %s69 = sphi 0, %s71
      %s72 = sphi 0, %s69
      %s73 = sphi 0, %s72
      %s89 = sphi 0, %s73
    $region4: #{tpu_custom_call.1} parent=1 // loop_header_branch
      %16 = sbr.rel (%p14) target = $region8
    $region5: #{tpu_custom_call.1} parent=1 // loop_body
      %s18 = ssub.s32 %s13, 1
      %s19 = ssub.s32 %s13, 2
      %s26 = sadd.s32 1, %s21
      %p27 = scmp.ge.s32.totalorder %s26, 2
      %s28 = scalar_select %p27, 0, %s26
      %s29 = sadd.s32 1, %s20
      %s30 = scalar_select %p27, %s29, %s20
      %p31 = scmp.ge.s32.totalorder %s30, 2
      %s32 = scalar_select %p31, 0, %s30
      %s33 = smul.u32 %s20, 2
      %s34 = sadd.s32 %s33, %s21
      %p35 = scmp.lt.s32.totalorder %s34, 2
      %s36 = scalar_select %p35, %s34, 2
      %s37 = smul.u32 %s32, 2
      %s38 = sadd.s32 %s37, %s28
      %p39 = scmp.lt.s32.totalorder %s38, 2
      %s40 = scalar_select %p39, %s38, 2
      %s41 = ssub.s32 %s36, %s40
      %p42 = scmp.eq.s32.totalorder %s41, 0
      %s44 = sadd.s32 %s43, 1
      %s45 = scalar_select %p42, %s43, %s44
      %p48 = pneg %p42
      %p49 = scmp.eq.s32.totalorder %s13, 3
      %p50 = por %p48, %p49
      %p51 = scmp.ne.s32.totalorder %s43, %s46
      %p52 = scmp.eq.s32.totalorder %s13, 0
      %p53 = por %p51, %p52
      %p54 = scmp.ne.s32.totalorder %s43, %s46
      %p55 = scmp.eq.s32.totalorder %s18, 3
      %p56 = por %p54, %p55
      %p57 = scmp.ne.s32.totalorder %s46, %s47
      %p58 = scmp.eq.s32.totalorder %s18, 0
      %p59 = por %p57, %p58
      %p60 = scmp.ne.s32.totalorder %s46, %s47
      %p61 = scmp.eq.s32.totalorder %s19, 3
      %p62 = por %p60, %p61
      %p64 = scmp.ne.s32.totalorder %s47, %s63
      %p65 = scmp.eq.s32.totalorder %s19, 0
      %p66 = por %p64, %p65
      %s67 = ssub.s32 %s20, %s32
      %p68 = scmp.eq.s32.totalorder %s67, 0
      %s70 = sadd.s32 %s69, 1
      %s71 = scalar_select %p68, %s69, %s70
      %p74 = pneg %p68
      %p75 = scmp.eq.s32.totalorder %s13, 3
      %p76 = por %p74, %p75
      %p77 = scmp.ne.s32.totalorder %s69, %s72
      %p78 = scmp.eq.s32.totalorder %s13, 0
      %p79 = por %p77, %p78
      %p80 = scmp.ne.s32.totalorder %s69, %s72
      %p81 = scmp.eq.s32.totalorder %s18, 3
      %p82 = por %p80, %p81
      %p83 = scmp.ne.s32.totalorder %s72, %s73
      %p84 = scmp.eq.s32.totalorder %s18, 0
      %p85 = por %p83, %p84
      %p86 = scmp.ne.s32.totalorder %s72, %s73
      %p87 = scmp.eq.s32.totalorder %s19, 3
      %p88 = por %p86, %p87
      %p90 = scmp.ne.s32.totalorder %s73, %s89
      %p91 = scmp.eq.s32.totalorder %s19, 0
      %p92 = por %p90, %p91
      %p93 = scmp.le.s32.totalorder 1, %s13
      %p94 = scmp.lt.s32.totalorder %s13, 5
      %p95 = pnand %p93, %p94
      %p96 = pneg %p95
      // Predicated region
      $region9: #{tpu_custom_call.1} parent=5 // pred_check
        _
      $region10: #{tpu_custom_call.1} parent=5 // pred_check_branch
        %98 = sbr.rel (%p95) target = $region12
      $region11: #{tpu_custom_call.1} parent=5 // pred_region
        %s99 = ssub.s32 %s13, 1
      $region12: #{tpu_custom_call.1} parent=5 // pred_fallthru
        _
      %p100 = scmp.lt.s32.totalorder %s13, 4
      // Predicated region
      $region13: #{tpu_custom_call.1} parent=5 // pred_check
        %p101 = pneg %p100
      $region14: #{tpu_custom_call.1} parent=5 // pred_check_branch
        %103 = sbr.rel (%p101) target = $region16
      $region15: #{tpu_custom_call.1} parent=5 // pred_region
        // Predicated region
        $region17: #{tpu_custom_call.1} parent=15 // pred_check
          %p104 = pneg %p53
        $region18: #{tpu_custom_call.1} parent=15 // pred_check_branch
          %106 = sbr.rel (%p104) target = $region20
        $region19: #{tpu_custom_call.1} parent=15 // pred_region
          %s107 = sand.u32 %s43, 1
          %s108 = scalar_lea.sflag [#allocation3], %s107
          %s109 = sand.u32 %s43, 1
          %s110 = smul.addr %s109, 32
          %s111 = scalar_lea.vmem [#allocation2], %s110
          %s112 = smul.u32 %s20, 2
          %s113 = sadd.s32 %s112, %s21
          %p114 = scmp.lt.s32.totalorder %s113, 2
          %s115 = scalar_select %p114, %s113, 2
          %s116 = smul.u32 4, %s115
          %s117 = ssub.s32 9, %s116
          %p118 = scmp.lt.s32.totalorder %s117, 4
          %s119 = scalar_select %p118, %s117, 4
          %s120 = smul.u32 8, %s119
          %s121 = ssub.s32 32, %s120
          %s122 = sshll.u32 %s121, 4
          %123 = vsyncadd %s108, %s122
          %p124 = scmp.ne.s32.totalorder 0, %s120
          %s125 = smul.addr %s116, 8
          %s126 = scalar_lea.hbm %s0, %s125
          %s127 = smul.u32 8, %s119
          %s128 = sshll.u32 %s126, 4
          %s129 = int_to_ptr.hbm [resolvable:$true] %s128
          %s130 = sshll.u32 %s111, 4
          %s131 = int_to_ptr.vmem [resolvable:$true] %s130
          %s132 = sshll.u32 %s127, 4
          %136 = dma.hbm_to_vmem [thread:$0]  (%p124), %s129, %s132, %s131, %s108, 128, 128, 8
        $region20: #{tpu_custom_call.1} parent=15 // pred_fallthru
          _
      $region16: #{tpu_custom_call.1} parent=5 // pred_fallthru
        _
      %p137 = scmp.le.s32.totalorder 1, %s13
      %p138 = scmp.lt.s32.totalorder %s13, 5
      %p139 = pnand %p137, %p138
      %p140 = pneg %p139
      // Predicated region
      $region21: #{tpu_custom_call.1} parent=5 // pred_check
        _
      $region22: #{tpu_custom_call.1} parent=5 // pred_check_branch
        %142 = sbr.rel (%p139) target = $region24
      $region23: #{tpu_custom_call.1} parent=5 // pred_region
        %s143 = ssub.s32 %s13, 1
        %s144 = sand.u32 %s46, 1
        %s145 = scalar_lea.sflag [#allocation3], %s144
        %s146 = sand.u32 %s46, 1
        %s147 = smul.addr %s146, 32
        %s148 = scalar_lea.vmem [#allocation2], %s147
        // Predicated region
        $region25: #{tpu_custom_call.1} parent=23 // pred_check
          %p149 = pneg %p59
        $region26: #{tpu_custom_call.1} parent=23 // pred_check_branch
          %151 = sbr.rel (%p149) target = $region28
        $region27: #{tpu_custom_call.1} parent=23 // pred_region
          %153 = dma.done %s145, 512
        $region28: #{tpu_custom_call.1} parent=23 // pred_fallthru
          _
        %s154 = sand.u32 %s46, 1
        %s155 = scalar_lea.sflag [#allocation3], %s154
        %s156 = sand.u32 %s46, 1
        %s157 = smul.addr %s156, 32
        %s158 = scalar_lea.vmem [#allocation2], %s157
        %p159 = pneg %p59
        %p160 = pneg %p56
        %p161 = pneg %p85
        %p162 = pneg %p82
        %s163 = sand.u32 %s72, 1
        %s164 = scalar_lea.sflag [#allocation4], %s163
        %s165 = sand.u32 %s72, 1
        %s166 = smul.addr %s165, 32
        %s167 = scalar_lea.vmem [#allocation5], %s166
        %s168 = smul.u32 %s22, 2
        %s169 = sadd.s32 %s168, %s23
        %p170 = scmp.lt.s32.totalorder %s169, 2
        %s171 = scalar_select %p170, %s169, 2
        %s172 = smul.u32 4, %s171
        %s173 = ssub.s32 9, %s172
        %p174 = scmp.lt.s32.totalorder %s173, 4
        %s175 = scalar_select %p174, %s173, 4
        %s176 = smul.u32 8, %s175
        %s177 = smul.u32 4, %s22
        %p178 = scmp.eq.s32.totalorder %s23, 0
        // Predicated region
        $region29: #{tpu_custom_call.1} parent=23 // pred_check
          %p179 = pneg %p178
        $region30: #{tpu_custom_call.1} parent=23 // pred_check_branch
          %181 = sbr.rel (%p179) target = $region32
        $region31: #{tpu_custom_call.1} parent=23 // pred_region
          %182 = vst [vmem:[%s167] sm:$0xff] 0.0
          %183 = vst [vmem:[%s167 + $0x8] sm:$0xff] 0.0
          %184 = vst [vmem:[%s167 + $0x10] sm:$0xff] 0.0
          %185 = vst [vmem:[%s167 + $0x18] sm:$0xff] 0.0
        $region32: #{tpu_custom_call.1} parent=23 // pred_fallthru
          _
        %s186 = smul.u32 %s22, 2
        %s187 = sadd.s32 %s186, %s23
        %s188 = smul.u32 %s187, 32
        %s189 = sadd.s32 %s188, 32
        %p190 = scmp.le.s32.totalorder %s189, 70
        // Predicated region
        $region33: #{tpu_custom_call.1} parent=23 // pred_check
          %p191 = pneg %p190
        $region34: #{tpu_custom_call.1} parent=23 // pred_check_branch
          %193 = sbr.rel (%p191) target = $region36
        $region35: #{tpu_custom_call.1} parent=23 // pred_region
          %v194 = vld [vmem:[%s148] sm:$0xff]
          %v195 = vld [vmem:[%s148 + $0x8] sm:$0xff]
          %v196 = vld [vmem:[%s148 + $0x10] sm:$0xff]
          %v197 = vld [vmem:[%s148 + $0x18] sm:$0xff]
          %v198 = vld [vmem:[%s167] sm:$0xff]
          %v199 = vld [vmem:[%s167 + $0x8] sm:$0xff]
          %v200 = vld [vmem:[%s167 + $0x10] sm:$0xff]
          %v201 = vld [vmem:[%s167 + $0x18] sm:$0xff]
          %v202 = vadd.f32 %v194, 0.0
          %v203 = vadd.f32 %v195, 0.0
          %v204 = vadd.f32 %v196, 0.0
          %v205 = vadd.f32 %v197, 0.0
          %v206 = vadd.f32 %v198, %v202
          %v207 = vadd.f32 %v199, %v203
          %v208 = vadd.f32 %v200, %v204
          %v209 = vadd.f32 %v201, %v205
          %210 = vst [vmem:[%s167] sm:$0xff] %v206
          %211 = vst [vmem:[%s167 + $0x8] sm:$0xff] %v207
          %212 = vst [vmem:[%s167 + $0x10] sm:$0xff] %v208
          %213 = vst [vmem:[%s167 + $0x18] sm:$0xff] %v209
        $region36: #{tpu_custom_call.1} parent=23 // pred_fallthru
          _
        %p214 = scmp.gt.s32.totalorder %s189, 70
        // Predicated region
        $region37: #{tpu_custom_call.1} parent=23 // pred_check
          %p215 = pneg %p214
        $region38: #{tpu_custom_call.1} parent=23 // pred_check_branch
          %217 = sbr.rel (%p215) target = $region40
        $region39: #{tpu_custom_call.1} parent=23 // pred_region
          %v218 = vlaneseq
          %v219 = vshrl.u32 %v218, 7
          %v220 = vadd.s32 %v219, 8
          %v221 = vadd.s32 %v219, 16
          %v222 = vadd.s32 %v219, 24
          %v223 = vstv %s188
          %v224 = vadd.s32 %v219, %v223
          %v225 = vadd.s32 %v220, %v223
          %v226 = vadd.s32 %v221, %v223
          %v227 = vadd.s32 %v222, %v223
          %vm228 = vcmp.lt.s32.totalorder %v224, 70
          %vm229 = vcmp.lt.s32.totalorder %v225, 70
          %vm230 = vcmp.lt.s32.totalorder %v226, 70
          %vm231 = vcmp.lt.s32.totalorder %v227, 70
          %v232 = vld [vmem:[%s148] sm:$0xff]
          %v233 = vld [vmem:[%s148 + $0x8] sm:$0xff]
          %v234 = vld [vmem:[%s148 + $0x10] sm:$0xff]
          %v235 = vld [vmem:[%s148 + $0x18] sm:$0xff]
          %v236 = vsel %vm228, 1, 0
          %v237 = vsel %vm229, 1, 0
          %v238 = vsel %vm230, 1, 0
          %v239 = vsel %vm231, 1, 0
          %vm240 = vcmp.eq.s32.totalorder %v236, 1
          %vm241 = vcmp.eq.s32.totalorder %v237, 1
          %vm242 = vcmp.eq.s32.totalorder %v238, 1
          %vm243 = vcmp.eq.s32.totalorder %v239, 1
          %v244 = vsel %vm240, %v232, 0.0
          %v245 = vsel %vm241, %v233, 0.0
          %v246 = vsel %vm242, %v234, 0.0
          %v247 = vsel %vm243, %v235, 0.0
          %v248 = vld [vmem:[%s167] sm:$0xff]
          %v249 = vld [vmem:[%s167 + $0x8] sm:$0xff]
          %v250 = vld [vmem:[%s167 + $0x10] sm:$0xff]
          %v251 = vld [vmem:[%s167 + $0x18] sm:$0xff]
          %v252 = vadd.f32 %v244, 0.0
          %v253 = vadd.f32 %v245, 0.0
          %v254 = vadd.f32 %v246, 0.0
          %v255 = vadd.f32 %v247, 0.0
          %v256 = vadd.f32 %v248, %v252
          %v257 = vadd.f32 %v249, %v253
          %v258 = vadd.f32 %v250, %v254
          %v259 = vadd.f32 %v251, %v255
          %260 = vst [vmem:[%s167] sm:$0xff] %v256
          %261 = vst [vmem:[%s167 + $0x8] sm:$0xff] %v257
          %262 = vst [vmem:[%s167 + $0x10] sm:$0xff] %v258
          %263 = vst [vmem:[%s167 + $0x18] sm:$0xff] %v259
        $region40: #{tpu_custom_call.1} parent=23 // pred_fallthru
          _
        %s264 = sand.u32 %s72, 1
        %s265 = scalar_lea.sflag [#allocation4], %s264
        %s266 = sand.u32 %s72, 1
        %s267 = smul.addr %s266, 32
        %s268 = scalar_lea.vmem [#allocation5], %s267
        // Predicated region
        $region41: #{tpu_custom_call.1} parent=23 // pred_check
          %p269 = pneg %p82
        $region42: #{tpu_custom_call.1} parent=23 // pred_check_branch
          %271 = sbr.rel (%p269) target = $region44
        $region43: #{tpu_custom_call.1} parent=23 // pred_region
          %s272 = smul.u32 4, %s22
          %274 = vsyncadd %s265, 0
          %s275 = smul.addr %s272, 8
          %s276 = scalar_lea.hbm %s1, %s275
          %s277 = sshll.u32 %s268, 4
          %s278 = int_to_ptr.vmem [resolvable:$true] %s277
          %s279 = sshll.u32 %s276, 4
          %s280 = int_to_ptr.hbm [resolvable:$true] %s279
          %285 = dma.vmem_to_hbm [thread:$0]  %s278, 512, %s280, %s265, 128, 128, 8
        $region44: #{tpu_custom_call.1} parent=23 // pred_fallthru
          _
      $region24: #{tpu_custom_call.1} parent=5 // pred_fallthru
        _
      %p286 = scmp.le.s32.totalorder 2, %s13
      // Predicated region
      $region45: #{tpu_custom_call.1} parent=5 // pred_check
        %p287 = pneg %p286
      $region46: #{tpu_custom_call.1} parent=5 // pred_check_branch
        %289 = sbr.rel (%p287) target = $region48
      $region47: #{tpu_custom_call.1} parent=5 // pred_region
        %s290 = ssub.s32 %s13, 2
        // Predicated region
        $region49: #{tpu_custom_call.1} parent=47 // pred_check
          %p291 = pneg %p88
        $region50: #{tpu_custom_call.1} parent=47 // pred_check_branch
          %293 = sbr.rel (%p291) target = $region52
        $region51: #{tpu_custom_call.1} parent=47 // pred_region
          %s294 = sand.u32 %s73, 1
          %s295 = scalar_lea.sflag [#allocation4], %s294
          %s296 = sand.u32 %s73, 1
          %s297 = smul.addr %s296, 32
          %s298 = scalar_lea.vmem [#allocation5], %s297
          %300 = dma.done %s295, 512
        $region52: #{tpu_custom_call.1} parent=47 // pred_fallthru
          _
      $region48: #{tpu_custom_call.1} parent=5 // pred_fallthru
        _
    $region6: #{tpu_custom_call.1} parent=1 // loop_footer
      %s17 = sadd.s32 1, %s13
    $region7: #{tpu_custom_call.1} parent=1 // loop_footer_branch
      %12 = sbr.rel target = $region3
    $region8: #{tpu_custom_call.1} parent=1 // loop_exit
      _
    %301 = vsyncpa [#allocation3], 1
    %s302 = scalar_lea.sflag [#allocation3], 1
    %303 = vsyncpa %s302, 1
    %304 = vsyncpa [#allocation4], 1
    %s305 = scalar_lea.sflag [#allocation4], 1
    %306 = vsyncpa %s305, 1

</llo_original>
